<compile_context>
chip_gen: v7x
topology: tpu7x:2x2x1
jax: 0.10.0
libtpu: 0.0.40
codegen_flags: <defaults>
</compile_context>

<pallas_src>
import functools

import jax
import jax.numpy as jnp
from jax import lax
from jax.experimental import pallas as pl
from jax.experimental.pallas import tpu as pltpu


def _sepconv_kernel(x_ref, wdw_ref, wpw_ref, o_ref, xpad_ref, acc_ref, *,
                    C, H, W, Cout, pad, c_chunk, pointwise_bf16):
    # x_ref:    (C, H*W)            one flattened row-major image (lane-dense)
    # wdw_ref:  (C, 9)              depthwise 3x3 weights
    # wpw_ref:  (Cout, C)           pointwise 1x1 weights
    # o_ref:    (Cout, H*W)         output image (lane-dense, unmasked stores)
    # xpad_ref: (C, H*W + 2*(W+1))  VMEM scratch: halo-padded flat image
    # acc_ref:  (C, H*W) f32        VMEM scratch: depthwise result = matmul RHS
    HW = H * W
    halo = pad * W + pad  # one image row + one corner element on each side

    # ---- Stage 1: build the halo-padded flat image in VMEM (no wrapper HBM pad pass).
    zeros_halo = jnp.zeros((C, halo), xpad_ref.dtype)
    xpad_ref[:, pl.ds(0, halo)] = zeros_halo
    xpad_ref[:, pl.ds(halo + HW, halo)] = zeros_halo
    xpad_ref[:, pl.ds(halo, HW)] = x_ref[...]

    # ---- Hoisted invariants (Mosaic does not CSE re-materialized broadcasts/compares).
    col = lax.broadcasted_iota(jnp.int32, (1, HW), dimension=1) % W
    keep_left = col >= pad          # j == 0 taps: source column w-1 must be >= 0
    keep_right = col < (W - pad)    # j == 2 taps: source column w+1 must be <  W
    wdw = wdw_ref[...].astype(jnp.float32)   # (C, 9), single load

    # ---- Stage 2: depthwise 3x3, channel-chunked so the accumulator stays in vregs.
    for c0 in range(0, C, c_chunk):
        cs = min(c_chunk, C - c0)
        acc = jnp.zeros((cs, HW), jnp.float32)
        for i in range(3):
            for j in range(3):
                t = i * 3 + j
                # Static-offset ref slice of the padded image (plain offset load).
                tap = xpad_ref[pl.ds(c0, cs), pl.ds(i * W + j, HW)].astype(jnp.float32)
                # Lanes whose horizontal source column wrapped to a neighbouring row
                # in the flat layout must contribute zero (zero-padding semantics).
                if j == 0:
                    tap = jnp.where(keep_left, tap, 0.0)
                elif j == 2:
                    tap = jnp.where(keep_right, tap, 0.0)
                acc = acc + tap * wdw[c0:c0 + cs, t:t + 1]
        acc_ref[pl.ds(c0, cs), :] = acc      # one VMEM store per finished chunk

    # ---- Stage 3: pointwise 1x1 = (Cout, C) @ (C, H*W) on the MXU, lane-dense output.
    if pointwise_bf16:
        lhs = wpw_ref[...].astype(jnp.bfloat16)
        rhs = acc_ref[...].astype(jnp.bfloat16)
    else:
        lhs = wpw_ref[...].astype(jnp.float32)
        rhs = acc_ref[...]
    out = jnp.dot(lhs, rhs, preferred_element_type=jnp.float32)
    o_ref[...] = out.astype(o_ref.dtype)


def separable_conv2d(x_nchw, w_depthwise, w_pointwise, *, c_chunk=64, pointwise_bf16=True):
    """x_nchw: (N, C, H, W); w_depthwise: (C, 1, 3, 3); w_pointwise: (Cout, C, 1, 1)."""
    N, C, H, W = x_nchw.shape
    KH, KW = int(w_depthwise.shape[2]), int(w_depthwise.shape[3])
    Cout = int(w_pointwise.shape[0])
    pad = 1  # SeparableConv2d hardcodes padding=1 (kernel_size=3)
    assert KH == 3 and KW == 3, "module uses kernel_size=3"
    HW = H * W
    halo = pad * W + pad
    c_chunk = max(1, min(int(c_chunk), C))

    # Wrapper glue: only free contiguous reshapes (NCHW -> (N, C, H*W)); no HBM pad pass.
    x_flat = x_nchw.reshape(N, C, HW)
    wdw = w_depthwise[:, 0].reshape(C, KH * KW)   # (C, 9)
    wpw = w_pointwise[:, :, 0, 0]                 # (Cout, C)

    kernel = functools.partial(
        _sepconv_kernel, C=C, H=H, W=W, Cout=Cout, pad=pad,
        c_chunk=c_chunk, pointwise_bf16=pointwise_bf16)

    itemsize = jnp.dtype(x_nchw.dtype).itemsize
    # Per-step VMEM footprint: double-buffered x/out blocks + resident weights + scratch.
    x_blk = C * HW * itemsize
    out_blk = Cout * HW * itemsize
    w_bytes = (wdw.size + wpw.size) * itemsize
    scratch_bytes = C * (HW + 2 * halo) * itemsize + C * HW * 4
    vmem_bytes = 2 * (x_blk + out_blk) + 2 * w_bytes + scratch_bytes + (4 << 20)
    vmem_bytes = int(min(max(vmem_bytes, 16 << 20), 64 << 20))

    cost = pl.CostEstimate(
        flops=int(2 * N * HW * C * (KH * KW + Cout)),
        transcendentals=0,
        bytes_accessed=int((x_flat.size + wdw.size + wpw.size + N * Cout * HW) * itemsize),
    )

    out_flat = pl.pallas_call(
        kernel,
        out_shape=jax.ShapeDtypeStruct((N, Cout, HW), x_nchw.dtype),
        grid=(N,),
        in_specs=[
            pl.BlockSpec((None, C, HW), lambda n: (n, 0, 0)),   # one image per step
            pl.BlockSpec((C, KH * KW), lambda n: (0, 0)),       # weights stay resident
            pl.BlockSpec((Cout, C), lambda n: (0, 0)),
        ],
        out_specs=pl.BlockSpec((None, Cout, HW), lambda n: (n, 0, 0)),
        scratch_shapes=[
            pltpu.VMEM((C, HW + 2 * halo), x_nchw.dtype),  # halo-padded flat image
            pltpu.VMEM((C, HW), jnp.float32),              # depthwise result (matmul RHS)
        ],
        compiler_params=pltpu.CompilerParams(
            dimension_semantics=("parallel",),   # v7x: shard batch across the 2 TCs
            vmem_limit_bytes=vmem_bytes,
        ),
        cost_estimate=cost,
    )(x_flat, wdw, wpw)

    # Output is already NCHW-ordered; only a free reshape is needed.
    return out_flat.reshape(N, Cout, H, W)


def _reference(x_nchw, w_depthwise, w_pointwise):
    # Pure-JAX reference matching PyTorch semantics (NCHW, groups=C depthwise, then 1x1).
    C = x_nchw.shape[1]
    dw = lax.conv_general_dilated(
        x_nchw, w_depthwise, window_strides=(1, 1), padding=((1, 1), (1, 1)),
        dimension_numbers=("NCHW", "OIHW", "NCHW"), feature_group_count=C)
    pw = lax.conv_general_dilated(
        dw, w_pointwise, window_strides=(1, 1), padding="VALID",
        dimension_numbers=("NCHW", "OIHW", "NCHW"))
    return pw


if __name__ == "__main__":
    # Small deterministic setup: in_channels=4, out_channels=8, kernel_size=3.
    N, C, H, W = 2, 4, 16, 16
    Cout, K = 8, 3

    key = jax.random.PRNGKey(0)
    kx, kdw, kpw = jax.random.split(key, 3)
    x = jax.random.normal(kx, (N, C, H, W), dtype=jnp.float32)
    w_depthwise = jax.random.normal(kdw, (C, 1, K, K), dtype=jnp.float32) * 0.1
    w_pointwise = jax.random.normal(kpw, (Cout, C, 1, 1), dtype=jnp.float32) * 0.1

    ref = jax.block_until_ready(_reference(x, w_depthwise, w_pointwise))

    # Exact (f32 pointwise) path, c_chunk=2 so the channel-chunk loop is exercised.
    out_f32 = separable_conv2d(x, w_depthwise, w_pointwise, c_chunk=2, pointwise_bf16=False)
    out_f32 = jax.block_until_ready(out_f32)
    assert out_f32.shape == (N, Cout, H, W), out_f32.shape
    assert jnp.allclose(out_f32, ref, atol=1e-4, rtol=1e-4), \
        float(jnp.max(jnp.abs(out_f32 - ref)))

    # Fast (bf16 pointwise, f32 accumulation) path — the production configuration.
    out_bf16 = separable_conv2d(x, w_depthwise, w_pointwise, c_chunk=2, pointwise_bf16=True)
    out_bf16 = jax.block_until_ready(out_bf16)
    assert out_bf16.shape == (N, Cout, H, W), out_bf16.shape
    assert jnp.allclose(out_bf16, ref, atol=2e-2, rtol=2e-2), \
        float(jnp.max(jnp.abs(out_bf16 - ref)))

    print("KERNEL_OK")
</pallas_src>

<mosaic_0001>
module attributes {stable_mosaic.version = 11 : i64} {
  func.func @_sepconv_kernel(%arg0: i32, %arg1: memref<1x4x256xf32, #tpu.memory_space<vmem>>, %arg2: memref<4x9xf32, #tpu.memory_space<vmem>>, %arg3: memref<8x4xf32, #tpu.memory_space<vmem>>, %arg4: memref<1x8x256xf32, #tpu.memory_space<vmem>>, %arg5: memref<4x290xf32, #tpu.memory_space<vmem>>, %arg6: memref<4x256xf32, #tpu.memory_space<vmem>>) attributes {dimension_semantics = [#tpu.dimension_semantics<parallel>], iteration_bounds = array<i64: 2>, scalar_prefetch = 0 : i64, scratch_operands = 2 : i64, tpu.core_type = #tpu.core_type<tc>, window_params = [{transform_indices = @transform_0, window_bounds = array<i64: 1, 4, 256>}, {pipeline_mode = #tpu.pipeline_mode<synchronous>, transform_indices = @transform_1, window_bounds = array<i64: 4, 9>}, {pipeline_mode = #tpu.pipeline_mode<synchronous>, transform_indices = @transform_2, window_bounds = array<i64: 8, 4>}, {transform_indices = @transform_3, window_bounds = array<i64: 1, 8, 256>}]} {
    %cst = arith.constant 0.000000e+00 : f32
    %0 = vector.broadcast %cst : f32 to vector<4x17xf32>
    %c0 = arith.constant 0 : index
    %c0_0 = arith.constant 0 : index
    %1 = vector.load %arg5[%c0, %c0_0] : memref<4x290xf32, #tpu.memory_space<vmem>>, vector<4x17xf32>
    tpu.vector_store %arg5[%c0, %c0_0], %0 {strides = array<i32>} : memref<4x290xf32, #tpu.memory_space<vmem>>, vector<4x17xf32>,
    %c0_1 = arith.constant 0 : index
    %c273 = arith.constant 273 : index
    %2 = vector.load %arg5[%c0_1, %c273] : memref<4x290xf32, #tpu.memory_space<vmem>>, vector<4x17xf32>
    tpu.vector_store %arg5[%c0_1, %c273], %0 {strides = array<i32>} : memref<4x290xf32, #tpu.memory_space<vmem>>, vector<4x17xf32>,
    %c0_2 = arith.constant 0 : index
    %c0_3 = arith.constant 0 : index
    %c0_4 = arith.constant 0 : index
    %3 = vector.load %arg1[%c0_2, %c0_3, %c0_4] : memref<1x4x256xf32, #tpu.memory_space<vmem>>, vector<1x4x256xf32>
    %4 = vector.shape_cast %3 : vector<1x4x256xf32> to vector<4x256xf32>
    %c0_5 = arith.constant 0 : index
    %c17 = arith.constant 17 : index
    %5 = vector.load %arg5[%c0_5, %c17] : memref<4x290xf32, #tpu.memory_space<vmem>>, vector<4x256xf32>
    tpu.vector_store %arg5[%c0_5, %c17], %4 {strides = array<i32>} : memref<4x290xf32, #tpu.memory_space<vmem>>, vector<4x256xf32>,
    %6 = tpu.iota {dimensions = array<i32: 1>} : vector<1x256xi32>
    %c16_i32 = arith.constant 16 : i32
    %c0_i32 = arith.constant 0 : i32
    %7 = arith.cmpi eq, %c16_i32, %c0_i32 : i32
    %c1_i32 = arith.constant 1 : i32
    %8 = arith.select %7, %c1_i32, %c16_i32 : i32
    %9 = vector.broadcast %8 : i32 to vector<1x256xi32>
    %10 = arith.remsi %6, %9 : vector<1x256xi32>
    %c0_i32_6 = arith.constant 0 : i32
    %11 = vector.broadcast %c0_i32_6 : i32 to vector<1x256xi32>
    %12 = arith.cmpi ne, %10, %11 : vector<1x256xi32>
    %c0_i32_7 = arith.constant 0 : i32
    %13 = vector.broadcast %c0_i32_7 : i32 to vector<1x256xi32>
    %14 = arith.cmpi slt, %10, %13 : vector<1x256xi32>
    %c0_i32_8 = arith.constant 0 : i32
    %15 = arith.cmpi slt, %8, %c0_i32_8 : i32
    %16 = vector.broadcast %15 : i1 to vector<1x256xi1>
    %17 = vector.broadcast %16 : vector<1x256xi1> to vector<1x256xi1>
    %18 = arith.xori %14, %17 : vector<1x256xi1>
    %19 = arith.andi %18, %12 : vector<1x256xi1>
    %20 = vector.broadcast %8 : i32 to vector<1x256xi32>
    %21 = arith.addi %10, %20 : vector<1x256xi32>
    %22 = arith.select %19, %21, %10 : vector<1x256xi1>, vector<1x256xi32>
    %c1_i32_9 = arith.constant 1 : i32
    %23 = vector.broadcast %c1_i32_9 : i32 to vector<1x256xi32>
    %24 = arith.cmpi sge, %22, %23 : vector<1x256xi32>
    %c15_i32 = arith.constant 15 : i32
    %25 = vector.broadcast %c15_i32 : i32 to vector<1x256xi32>
    %26 = arith.cmpi slt, %22, %25 : vector<1x256xi32>
    %c0_10 = arith.constant 0 : index
    %c0_11 = arith.constant 0 : index
    %27 = vector.load %arg2[%c0_10, %c0_11] : memref<4x9xf32, #tpu.memory_space<vmem>>, vector<4x9xf32>
    %cst_12 = arith.constant 0.000000e+00 : f32
    %28 = vector.broadcast %cst_12 : f32 to vector<2x256xf32>
    %c0_13 = arith.constant 0 : index
    %c0_14 = arith.constant 0 : index
    %29 = vector.load %arg5[%c0_13, %c0_14] : memref<4x290xf32, #tpu.memory_space<vmem>>, vector<2x256xf32>
    %cst_15 = arith.constant 0.000000e+00 : f32
    %30 = vector.shape_cast %24 : vector<1x256xi1> to vector<1x256xi1>
    %31 = vector.broadcast %30 : vector<1x256xi1> to vector<2x256xi1>
    %32 = vector.broadcast %cst_15 : f32 to vector<2x256xf32>
    %33 = arith.select %31, %29, %32 : vector<2x256xi1>, vector<2x256xf32>
    %34 = vector.extract_strided_slice %27 {offsets = [0, 0], sizes = [2, 1], strides = [1, 1]} : vector<4x9xf32> to vector<2x1xf32>
    %35 = vector.broadcast %34 : vector<2x1xf32> to vector<2x256xf32>
    %36 = arith.mulf %33, %35 : vector<2x256xf32>
    %37 = arith.addf %28, %36 : vector<2x256xf32>
    %c0_16 = arith.constant 0 : index
    %c1 = arith.constant 1 : index
    %38 = vector.load %arg5[%c0_16, %c1] : memref<4x290xf32, #tpu.memory_space<vmem>>, vector<2x256xf32>
    %39 = vector.extract_strided_slice %27 {offsets = [0, 1], sizes = [2, 1], strides = [1, 1]} : vector<4x9xf32> to vector<2x1xf32>
    %40 = vector.broadcast %39 : vector<2x1xf32> to vector<2x256xf32>
    %41 = arith.mulf %38, %40 : vector<2x256xf32>
    %42 = arith.addf %37, %41 : vector<2x256xf32>
    %c0_17 = arith.constant 0 : index
    %c2 = arith.constant 2 : index
    %43 = vector.load %arg5[%c0_17, %c2] : memref<4x290xf32, #tpu.memory_space<vmem>>, vector<2x256xf32>
    %cst_18 = arith.constant 0.000000e+00 : f32
    %44 = vector.shape_cast %26 : vector<1x256xi1> to vector<1x256xi1>
    %45 = vector.broadcast %44 : vector<1x256xi1> to vector<2x256xi1>
    %46 = vector.broadcast %cst_18 : f32 to vector<2x256xf32>
    %47 = arith.select %45, %43, %46 : vector<2x256xi1>, vector<2x256xf32>
    %48 = vector.extract_strided_slice %27 {offsets = [0, 2], sizes = [2, 1], strides = [1, 1]} : vector<4x9xf32> to vector<2x1xf32>
    %49 = vector.broadcast %48 : vector<2x1xf32> to vector<2x256xf32>
    %50 = arith.mulf %47, %49 : vector<2x256xf32>
    %51 = arith.addf %42, %50 : vector<2x256xf32>
    %c0_19 = arith.constant 0 : index
    %c16 = arith.constant 16 : index
    %52 = vector.load %arg5[%c0_19, %c16] : memref<4x290xf32, #tpu.memory_space<vmem>>, vector<2x256xf32>
    %cst_20 = arith.constant 0.000000e+00 : f32
    %53 = vector.shape_cast %24 : vector<1x256xi1> to vector<1x256xi1>
    %54 = vector.broadcast %53 : vector<1x256xi1> to vector<2x256xi1>
    %55 = vector.broadcast %cst_20 : f32 to vector<2x256xf32>
    %56 = arith.select %54, %52, %55 : vector<2x256xi1>, vector<2x256xf32>
    %57 = vector.extract_strided_slice %27 {offsets = [0, 3], sizes = [2, 1], strides = [1, 1]} : vector<4x9xf32> to vector<2x1xf32>
    %58 = vector.broadcast %57 : vector<2x1xf32> to vector<2x256xf32>
    %59 = arith.mulf %56, %58 : vector<2x256xf32>
    %60 = arith.addf %51, %59 : vector<2x256xf32>
    %c0_21 = arith.constant 0 : index
    %c17_22 = arith.constant 17 : index
    %61 = vector.load %arg5[%c0_21, %c17_22] : memref<4x290xf32, #tpu.memory_space<vmem>>, vector<2x256xf32>
    %62 = vector.extract_strided_slice %27 {offsets = [0, 4], sizes = [2, 1], strides = [1, 1]} : vector<4x9xf32> to vector<2x1xf32>
    %63 = vector.broadcast %62 : vector<2x1xf32> to vector<2x256xf32>
    %64 = arith.mulf %61, %63 : vector<2x256xf32>
    %65 = arith.addf %60, %64 : vector<2x256xf32>
    %c0_23 = arith.constant 0 : index
    %c18 = arith.constant 18 : index
    %66 = vector.load %arg5[%c0_23, %c18] : memref<4x290xf32, #tpu.memory_space<vmem>>, vector<2x256xf32>
    %cst_24 = arith.constant 0.000000e+00 : f32
    %67 = vector.shape_cast %26 : vector<1x256xi1> to vector<1x256xi1>
    %68 = vector.broadcast %67 : vector<1x256xi1> to vector<2x256xi1>
    %69 = vector.broadcast %cst_24 : f32 to vector<2x256xf32>
    %70 = arith.select %68, %66, %69 : vector<2x256xi1>, vector<2x256xf32>
    %71 = vector.extract_strided_slice %27 {offsets = [0, 5], sizes = [2, 1], strides = [1, 1]} : vector<4x9xf32> to vector<2x1xf32>
    %72 = vector.broadcast %71 : vector<2x1xf32> to vector<2x256xf32>
    %73 = arith.mulf %70, %72 : vector<2x256xf32>
    %74 = arith.addf %65, %73 : vector<2x256xf32>
    %c0_25 = arith.constant 0 : index
    %c32 = arith.constant 32 : index
    %75 = vector.load %arg5[%c0_25, %c32] : memref<4x290xf32, #tpu.memory_space<vmem>>, vector<2x256xf32>
    %cst_26 = arith.constant 0.000000e+00 : f32
    %76 = vector.shape_cast %24 : vector<1x256xi1> to vector<1x256xi1>
    %77 = vector.broadcast %76 : vector<1x256xi1> to vector<2x256xi1>
    %78 = vector.broadcast %cst_26 : f32 to vector<2x256xf32>
    %79 = arith.select %77, %75, %78 : vector<2x256xi1>, vector<2x256xf32>
    %80 = vector.extract_strided_slice %27 {offsets = [0, 6], sizes = [2, 1], strides = [1, 1]} : vector<4x9xf32> to vector<2x1xf32>
    %81 = vector.broadcast %80 : vector<2x1xf32> to vector<2x256xf32>
    %82 = arith.mulf %79, %81 : vector<2x256xf32>
    %83 = arith.addf %74, %82 : vector<2x256xf32>
    %c0_27 = arith.constant 0 : index
    %c33 = arith.constant 33 : index
    %84 = vector.load %arg5[%c0_27, %c33] : memref<4x290xf32, #tpu.memory_space<vmem>>, vector<2x256xf32>
    %85 = vector.extract_strided_slice %27 {offsets = [0, 7], sizes = [2, 1], strides = [1, 1]} : vector<4x9xf32> to vector<2x1xf32>
    %86 = vector.broadcast %85 : vector<2x1xf32> to vector<2x256xf32>
    %87 = arith.mulf %84, %86 : vector<2x256xf32>
    %88 = arith.addf %83, %87 : vector<2x256xf32>
    %c0_28 = arith.constant 0 : index
    %c34 = arith.constant 34 : index
    %89 = vector.load %arg5[%c0_28, %c34] : memref<4x290xf32, #tpu.memory_space<vmem>>, vector<2x256xf32>
    %cst_29 = arith.constant 0.000000e+00 : f32
    %90 = vector.shape_cast %26 : vector<1x256xi1> to vector<1x256xi1>
    %91 = vector.broadcast %90 : vector<1x256xi1> to vector<2x256xi1>
    %92 = vector.broadcast %cst_29 : f32 to vector<2x256xf32>
    %93 = arith.select %91, %89, %92 : vector<2x256xi1>, vector<2x256xf32>
    %94 = vector.extract_strided_slice %27 {offsets = [0, 8], sizes = [2, 1], strides = [1, 1]} : vector<4x9xf32> to vector<2x1xf32>
    %95 = vector.broadcast %94 : vector<2x1xf32> to vector<2x256xf32>
    %96 = arith.mulf %93, %95 : vector<2x256xf32>
    %97 = arith.addf %88, %96 : vector<2x256xf32>
    %c0_30 = arith.constant 0 : index
    %c0_31 = arith.constant 0 : index
    %98 = vector.load %arg6[%c0_30, %c0_31] : memref<4x256xf32, #tpu.memory_space<vmem>>, vector<2x256xf32>
    tpu.vector_store %arg6[%c0_30, %c0_31], %97 {strides = array<i32>} : memref<4x256xf32, #tpu.memory_space<vmem>>, vector<2x256xf32>,
    %cst_32 = arith.constant 0.000000e+00 : f32
    %99 = vector.broadcast %cst_32 : f32 to vector<2x256xf32>
    %c2_33 = arith.constant 2 : index
    %c0_34 = arith.constant 0 : index
    %100 = vector.load %arg5[%c2_33, %c0_34] : memref<4x290xf32, #tpu.memory_space<vmem>>, vector<2x256xf32>
    %cst_35 = arith.constant 0.000000e+00 : f32
    %101 = vector.shape_cast %24 : vector<1x256xi1> to vector<1x256xi1>
    %102 = vector.broadcast %101 : vector<1x256xi1> to vector<2x256xi1>
    %103 = vector.broadcast %cst_35 : f32 to vector<2x256xf32>
    %104 = arith.select %102, %100, %103 : vector<2x256xi1>, vector<2x256xf32>
    %105 = vector.extract_strided_slice %27 {offsets = [2, 0], sizes = [2, 1], strides = [1, 1]} : vector<4x9xf32> to vector<2x1xf32>
    %106 = vector.broadcast %105 : vector<2x1xf32> to vector<2x256xf32>
    %107 = arith.mulf %104, %106 : vector<2x256xf32>
    %108 = arith.addf %99, %107 : vector<2x256xf32>
    %c2_36 = arith.constant 2 : index
    %c1_37 = arith.constant 1 : index
    %109 = vector.load %arg5[%c2_36, %c1_37] : memref<4x290xf32, #tpu.memory_space<vmem>>, vector<2x256xf32>
    %110 = vector.extract_strided_slice %27 {offsets = [2, 1], sizes = [2, 1], strides = [1, 1]} : vector<4x9xf32> to vector<2x1xf32>
    %111 = vector.broadcast %110 : vector<2x1xf32> to vector<2x256xf32>
    %112 = arith.mulf %109, %111 : vector<2x256xf32>
    %113 = arith.addf %108, %112 : vector<2x256xf32>
    %c2_38 = arith.constant 2 : index
    %c2_39 = arith.constant 2 : index
    %114 = vector.load %arg5[%c2_38, %c2_39] : memref<4x290xf32, #tpu.memory_space<vmem>>, vector<2x256xf32>
    %cst_40 = arith.constant 0.000000e+00 : f32
    %115 = vector.shape_cast %26 : vector<1x256xi1> to vector<1x256xi1>
    %116 = vector.broadcast %115 : vector<1x256xi1> to vector<2x256xi1>
    %117 = vector.broadcast %cst_40 : f32 to vector<2x256xf32>
    %118 = arith.select %116, %114, %117 : vector<2x256xi1>, vector<2x256xf32>
    %119 = vector.extract_strided_slice %27 {offsets = [2, 2], sizes = [2, 1], strides = [1, 1]} : vector<4x9xf32> to vector<2x1xf32>
    %120 = vector.broadcast %119 : vector<2x1xf32> to vector<2x256xf32>
    %121 = arith.mulf %118, %120 : vector<2x256xf32>
    %122 = arith.addf %113, %121 : vector<2x256xf32>
    %c2_41 = arith.constant 2 : index
    %c16_42 = arith.constant 16 : index
    %123 = vector.load %arg5[%c2_41, %c16_42] : memref<4x290xf32, #tpu.memory_space<vmem>>, vector<2x256xf32>
    %cst_43 = arith.constant 0.000000e+00 : f32
    %124 = vector.shape_cast %24 : vector<1x256xi1> to vector<1x256xi1>
    %125 = vector.broadcast %124 : vector<1x256xi1> to vector<2x256xi1>
    %126 = vector.broadcast %cst_43 : f32 to vector<2x256xf32>
    %127 = arith.select %125, %123, %126 : vector<2x256xi1>, vector<2x256xf32>
    %128 = vector.extract_strided_slice %27 {offsets = [2, 3], sizes = [2, 1], strides = [1, 1]} : vector<4x9xf32> to vector<2x1xf32>
    %129 = vector.broadcast %128 : vector<2x1xf32> to vector<2x256xf32>
    %130 = arith.mulf %127, %129 : vector<2x256xf32>
    %131 = arith.addf %122, %130 : vector<2x256xf32>
    %c2_44 = arith.constant 2 : index
    %c17_45 = arith.constant 17 : index
    %132 = vector.load %arg5[%c2_44, %c17_45] : memref<4x290xf32, #tpu.memory_space<vmem>>, vector<2x256xf32>
    %133 = vector.extract_strided_slice %27 {offsets = [2, 4], sizes = [2, 1], strides = [1, 1]} : vector<4x9xf32> to vector<2x1xf32>
    %134 = vector.broadcast %133 : vector<2x1xf32> to vector<2x256xf32>
    %135 = arith.mulf %132, %134 : vector<2x256xf32>
    %136 = arith.addf %131, %135 : vector<2x256xf32>
    %c2_46 = arith.constant 2 : index
    %c18_47 = arith.constant 18 : index
    %137 = vector.load %arg5[%c2_46, %c18_47] : memref<4x290xf32, #tpu.memory_space<vmem>>, vector<2x256xf32>
    %cst_48 = arith.constant 0.000000e+00 : f32
    %138 = vector.shape_cast %26 : vector<1x256xi1> to vector<1x256xi1>
    %139 = vector.broadcast %138 : vector<1x256xi1> to vector<2x256xi1>
    %140 = vector.broadcast %cst_48 : f32 to vector<2x256xf32>
    %141 = arith.select %139, %137, %140 : vector<2x256xi1>, vector<2x256xf32>
    %142 = vector.extract_strided_slice %27 {offsets = [2, 5], sizes = [2, 1], strides = [1, 1]} : vector<4x9xf32> to vector<2x1xf32>
    %143 = vector.broadcast %142 : vector<2x1xf32> to vector<2x256xf32>
    %144 = arith.mulf %141, %143 : vector<2x256xf32>
    %145 = arith.addf %136, %144 : vector<2x256xf32>
    %c2_49 = arith.constant 2 : index
    %c32_50 = arith.constant 32 : index
    %146 = vector.load %arg5[%c2_49, %c32_50] : memref<4x290xf32, #tpu.memory_space<vmem>>, vector<2x256xf32>
    %cst_51 = arith.constant 0.000000e+00 : f32
    %147 = vector.shape_cast %24 : vector<1x256xi1> to vector<1x256xi1>
    %148 = vector.broadcast %147 : vector<1x256xi1> to vector<2x256xi1>
    %149 = vector.broadcast %cst_51 : f32 to vector<2x256xf32>
    %150 = arith.select %148, %146, %149 : vector<2x256xi1>, vector<2x256xf32>
    %151 = vector.extract_strided_slice %27 {offsets = [2, 6], sizes = [2, 1], strides = [1, 1]} : vector<4x9xf32> to vector<2x1xf32>
    %152 = vector.broadcast %151 : vector<2x1xf32> to vector<2x256xf32>
    %153 = arith.mulf %150, %152 : vector<2x256xf32>
    %154 = arith.addf %145, %153 : vector<2x256xf32>
    %c2_52 = arith.constant 2 : index
    %c33_53 = arith.constant 33 : index
    %155 = vector.load %arg5[%c2_52, %c33_53] : memref<4x290xf32, #tpu.memory_space<vmem>>, vector<2x256xf32>
    %156 = vector.extract_strided_slice %27 {offsets = [2, 7], sizes = [2, 1], strides = [1, 1]} : vector<4x9xf32> to vector<2x1xf32>
    %157 = vector.broadcast %156 : vector<2x1xf32> to vector<2x256xf32>
    %158 = arith.mulf %155, %157 : vector<2x256xf32>
    %159 = arith.addf %154, %158 : vector<2x256xf32>
    %c2_54 = arith.constant 2 : index
    %c34_55 = arith.constant 34 : index
    %160 = vector.load %arg5[%c2_54, %c34_55] : memref<4x290xf32, #tpu.memory_space<vmem>>, vector<2x256xf32>
    %cst_56 = arith.constant 0.000000e+00 : f32
    %161 = vector.shape_cast %26 : vector<1x256xi1> to vector<1x256xi1>
    %162 = vector.broadcast %161 : vector<1x256xi1> to vector<2x256xi1>
    %163 = vector.broadcast %cst_56 : f32 to vector<2x256xf32>
    %164 = arith.select %162, %160, %163 : vector<2x256xi1>, vector<2x256xf32>
    %165 = vector.extract_strided_slice %27 {offsets = [2, 8], sizes = [2, 1], strides = [1, 1]} : vector<4x9xf32> to vector<2x1xf32>
    %166 = vector.broadcast %165 : vector<2x1xf32> to vector<2x256xf32>
    %167 = arith.mulf %164, %166 : vector<2x256xf32>
    %168 = arith.addf %159, %167 : vector<2x256xf32>
    %c2_57 = arith.constant 2 : index
    %c0_58 = arith.constant 0 : index
    %169 = vector.load %arg6[%c2_57, %c0_58] : memref<4x256xf32, #tpu.memory_space<vmem>>, vector<2x256xf32>
    tpu.vector_store %arg6[%c2_57, %c0_58], %168 {strides = array<i32>} : memref<4x256xf32, #tpu.memory_space<vmem>>, vector<2x256xf32>,
    %c0_59 = arith.constant 0 : index
    %c0_60 = arith.constant 0 : index
    %170 = vector.load %arg3[%c0_59, %c0_60] : memref<8x4xf32, #tpu.memory_space<vmem>>, vector<8x4xf32>
    %c0_61 = arith.constant 0 : index
    %c0_62 = arith.constant 0 : index
    %171 = vector.load %arg6[%c0_61, %c0_62] : memref<4x256xf32, #tpu.memory_space<vmem>>, vector<4x256xf32>
    %cst_63 = arith.constant dense<0.000000e+00> : vector<8x256xf32>
    %172 = tpu.matmul %170, %171, %cst_63 {dimension_numbers = #tpu.dot_dimension_numbers<[1], [0], [0], [1], [0, 0, 1, 1], [], []>} : vector<8x4xf32>, vector<4x256xf32>, vector<8x256xf32> -> vector<8x256xf32>
    %c0_64 = arith.constant 0 : index
    %c0_65 = arith.constant 0 : index
    %c0_66 = arith.constant 0 : index
    %173 = vector.load %arg4[%c0_64, %c0_65, %c0_66] : memref<1x8x256xf32, #tpu.memory_space<vmem>>, vector<1x8x256xf32>
    %174 = vector.shape_cast %173 : vector<1x8x256xf32> to vector<8x256xf32>
    %175 = vector.shape_cast %172 : vector<8x256xf32> to vector<1x8x256xf32>
    tpu.vector_store %arg4[%c0_64, %c0_65, %c0_66], %175 {strides = array<i32>} : memref<1x8x256xf32, #tpu.memory_space<vmem>>, vector<1x8x256xf32>,
    return
  }
  func.func @transform_0(%arg0: i32) -> (i32, i32, i32) {
    %c0_i32 = arith.constant 0 : i32
    %c0_i32_0 = arith.constant 0 : i32
    %c0_i32_1 = arith.constant 0 : i32
    return %arg0, %c0_i32, %c0_i32_0 : i32, i32, i32
  }
  func.func @transform_1(%arg0: i32) -> (i32, i32) {
    %c0_i32 = arith.constant 0 : i32
    %c0_i32_0 = arith.constant 0 : i32
    %c0_i32_1 = arith.constant 0 : i32
    return %c0_i32, %c0_i32_0 : i32, i32
  }
  func.func @transform_2(%arg0: i32) -> (i32, i32) {
    %c0_i32 = arith.constant 0 : i32
    %c0_i32_0 = arith.constant 0 : i32
    %c0_i32_1 = arith.constant 0 : i32
    return %c0_i32, %c0_i32_0 : i32, i32
  }
  func.func @transform_3(%arg0: i32) -> (i32, i32, i32) {
    %c0_i32 = arith.constant 0 : i32
    %c0_i32_0 = arith.constant 0 : i32
    %c0_i32_1 = arith.constant 0 : i32
    return %arg0, %c0_i32, %c0_i32_0 : i32, i32, i32
  }
}

</mosaic_0001>

<llo_original>
// kernel: tpu_custom_call.1
$region0: #{tpu_custom_call.1}
  #allocation0 [shape = 'u32[]', space=smem, size = 0x4, offset = 0x4, fixed_abs, tag = 'smem constant byte address 0x4 - core index']
  #allocation1 [shape = 'u32[144,128]{1,0:T(1,128)}', space=vmem, size = 0x12000, scoped, tag = 'internal scratch']
  #allocation2 [shape = 'f32[4,290]{1,0:T(4,128)}', space=vmem, size = 0x1800, scoped, tag = 'scratch operand']
  #allocation3 [shape = 'f32[4,256]{1,0:T(4,128)}', space=vmem, size = 0x1000, scoped, tag = 'scratch operand']
  %s0 = inlined_call_operand.hbm [shape: f32[2,4,256], index: 0, kind: input, shape index: {}]
  %s1 = inlined_call_operand.vmem [shape: f32[4,9], index: 1, kind: input, shape index: {}]
  %s2 = inlined_call_operand.vmem [shape: f32[8,4], index: 2, kind: input, shape index: {}]
  %s3 = inlined_call_operand.hbm [shape: f32[2,8,256], index: 3, kind: output, shape index: {}]
  %s4 = sld [smem:[#allocation0]]
  $region49: #{tpu_custom_call.1} parent=0
    _
  %s6 = ssub.s32 1, %s4
  %s7 = scalar_select 0, %s6, %s4
  $region1: #{tpu_custom_call.1} parent=0
    #allocation4 [shape = 'u8[8192]{0}', space=vmem, size = 0x2000, scoped, tag = 'input window, operand 0']
    #allocation5 [shape = 's32[2]{0}', space=sflag, size = 0x8, scoped, tag = 'scoped memory for tpu_custom_call.1']
    #allocation6 [shape = 's32[2]{0}', space=sflag, size = 0x8, scoped, tag = 'scoped memory for tpu_custom_call.1']
    #allocation7 [shape = 'u8[16384]{0}', space=vmem, size = 0x4000, scoped, tag = 'output window, operand 0']
    %8 = vsyncpa [#allocation5], 0
    %s9 = scalar_lea.sflag [#allocation5], 1
    %10 = vsyncpa %s9, 0
    %11 = vsyncpa [#allocation6], 0
    %s12 = scalar_lea.sflag [#allocation6], 1
    %13 = vsyncpa %s12, 0
    loop: start=0, step=1, limit=4
    $region2: #{tpu_custom_call.1} parent=1 // loop_pre_header
      _
    $region3: #{tpu_custom_call.1} parent=1 // loop_header
      %s15 = sphi 0, %s19
      %p16 = scmp.ge.s32.totalorder %s15, 4
      %s25 = sphi 0, %s27
      %s28 = sphi 0, %s25
      %s29 = sphi 0, %s28
      %s45 = sphi 0, %s29
      %s49 = sphi 0, %s49
      %s51 = sphi 0, %s49
      %s52 = sphi 0, %s51
      %s66 = sphi 0, %s52
      %s70 = sphi 0, %s70
      %s72 = sphi 0, %s70
      %s73 = sphi 0, %s72
      %s87 = sphi 0, %s73
      %s93 = sphi 0, %s95
      %s96 = sphi 0, %s93
      %s97 = sphi 0, %s96
      %s113 = sphi 0, %s97
    $region4: #{tpu_custom_call.1} parent=1 // loop_header_branch
      %18 = sbr.rel (%p16) target = $region8
    $region5: #{tpu_custom_call.1} parent=1 // loop_body
      %s20 = ssub.s32 %s15, 1
      %s21 = ssub.s32 %s15, 2
      %s22 = sadd.s32 %s15, 1
      %s23 = ssub.s32 %s15, %s22
      %p24 = scmp.eq.s32.totalorder %s23, 0
      %s26 = sadd.s32 %s25, 1
      %s27 = scalar_select %p24, %s25, %s26
      %p30 = pneg %p24
      %p31 = scmp.eq.s32.totalorder %s15, 1
      %p32 = por %p30, %p31
      %p33 = scmp.ne.s32.totalorder %s25, %s28
      %p34 = scmp.eq.s32.totalorder %s15, 0
      %p35 = por %p33, %p34
      %p36 = scmp.ne.s32.totalorder %s25, %s28
      %p37 = scmp.eq.s32.totalorder %s20, 1
      %p38 = por %p36, %p37
      %p39 = scmp.ne.s32.totalorder %s28, %s29
      %p40 = scmp.eq.s32.totalorder %s20, 0
      %p41 = por %p39, %p40
      %p42 = scmp.ne.s32.totalorder %s28, %s29
      %p43 = scmp.eq.s32.totalorder %s21, 1
      %p44 = por %p42, %p43
      %p46 = scmp.ne.s32.totalorder %s29, %s45
      %p47 = scmp.eq.s32.totalorder %s21, 0
      %p48 = por %p46, %p47
      %s50 = sadd.s32 %s49, 1
      %p53 = scmp.eq.s32.totalorder %s15, 1
      %p54 = scmp.ne.s32.totalorder %s49, %s51
      %p55 = scmp.eq.s32.totalorder %s15, 0
      %p56 = por %p54, %p55
      %p57 = scmp.ne.s32.totalorder %s49, %s51
      %p58 = scmp.eq.s32.totalorder %s20, 1
      %p59 = por %p57, %p58
      %p60 = scmp.ne.s32.totalorder %s51, %s52
      %p61 = scmp.eq.s32.totalorder %s20, 0
      %p62 = por %p60, %p61
      %p63 = scmp.ne.s32.totalorder %s51, %s52
      %p64 = scmp.eq.s32.totalorder %s21, 1
      %p65 = por %p63, %p64
      %p67 = scmp.ne.s32.totalorder %s52, %s66
      %p68 = scmp.eq.s32.totalorder %s21, 0
      %p69 = por %p67, %p68
      %s71 = sadd.s32 %s70, 1
      %p74 = scmp.eq.s32.totalorder %s15, 1
      %p75 = scmp.ne.s32.totalorder %s70, %s72
      %p76 = scmp.eq.s32.totalorder %s15, 0
      %p77 = por %p75, %p76
      %p78 = scmp.ne.s32.totalorder %s70, %s72
      %p79 = scmp.eq.s32.totalorder %s20, 1
      %p80 = por %p78, %p79
      %p81 = scmp.ne.s32.totalorder %s72, %s73
      %p82 = scmp.eq.s32.totalorder %s20, 0
      %p83 = por %p81, %p82
      %p84 = scmp.ne.s32.totalorder %s72, %s73
      %p85 = scmp.eq.s32.totalorder %s21, 1
      %p86 = por %p84, %p85
      %p88 = scmp.ne.s32.totalorder %s73, %s87
      %p89 = scmp.eq.s32.totalorder %s21, 0
      %p90 = por %p88, %p89
      %s91 = ssub.s32 %s15, %s22
      %p92 = scmp.eq.s32.totalorder %s91, 0
      %s94 = sadd.s32 %s93, 1
      %s95 = scalar_select %p92, %s93, %s94
      %p98 = pneg %p92
      %p99 = scmp.eq.s32.totalorder %s15, 1
      %p100 = por %p98, %p99
      %p101 = scmp.ne.s32.totalorder %s93, %s96
      %p102 = scmp.eq.s32.totalorder %s15, 0
      %p103 = por %p101, %p102
      %p104 = scmp.ne.s32.totalorder %s93, %s96
      %p105 = scmp.eq.s32.totalorder %s20, 1
      %p106 = por %p104, %p105
      %p107 = scmp.ne.s32.totalorder %s96, %s97
      %p108 = scmp.eq.s32.totalorder %s20, 0
      %p109 = por %p107, %p108
      %p110 = scmp.ne.s32.totalorder %s96, %s97
      %p111 = scmp.eq.s32.totalorder %s21, 1
      %p112 = por %p110, %p111
      %p114 = scmp.ne.s32.totalorder %s97, %s113
      %p115 = scmp.eq.s32.totalorder %s21, 0
      %p116 = por %p114, %p115
      %p117 = scmp.le.s32.totalorder 1, %s15
      %p118 = scmp.lt.s32.totalorder %s15, 3
      %p119 = pnand %p117, %p118
      %p120 = pneg %p119
      // Predicated region
      $region9: #{tpu_custom_call.1} parent=5 // pred_check
        _
      $region10: #{tpu_custom_call.1} parent=5 // pred_check_branch
        %122 = sbr.rel (%p119) target = $region12
      $region11: #{tpu_custom_call.1} parent=5 // pred_region
        %s123 = ssub.s32 %s15, 1
        // Predicated region
        $region13: #{tpu_custom_call.1} parent=11 // pred_check
          %p124 = pneg %p62
        $region14: #{tpu_custom_call.1} parent=11 // pred_check_branch
          %126 = sbr.rel (%p124) target = $region16
        $region15: #{tpu_custom_call.1} parent=11 // pred_region
          _
        $region16: #{tpu_custom_call.1} parent=11 // pred_fallthru
          _
        // Predicated region
        $region17: #{tpu_custom_call.1} parent=11 // pred_check
          %p127 = pneg %p83
        $region18: #{tpu_custom_call.1} parent=11 // pred_check_branch
          %129 = sbr.rel (%p127) target = $region20
        $region19: #{tpu_custom_call.1} parent=11 // pred_region
          _
        $region20: #{tpu_custom_call.1} parent=11 // pred_fallthru
          _
      $region12: #{tpu_custom_call.1} parent=5 // pred_fallthru
        _
      %p130 = scmp.lt.s32.totalorder %s15, 2
      // Predicated region
      $region21: #{tpu_custom_call.1} parent=5 // pred_check
        %p131 = pneg %p130
      $region22: #{tpu_custom_call.1} parent=5 // pred_check_branch
        %133 = sbr.rel (%p131) target = $region24
      $region23: #{tpu_custom_call.1} parent=5 // pred_region
        // Predicated region
        $region25: #{tpu_custom_call.1} parent=23 // pred_check
          %p134 = pneg %p35
        $region26: #{tpu_custom_call.1} parent=23 // pred_check_branch
          %136 = sbr.rel (%p134) target = $region28
        $region27: #{tpu_custom_call.1} parent=23 // pred_region
          %s137 = sand.u32 %s25, 1
          %s138 = scalar_lea.sflag [#allocation5], %s137
          %s139 = sand.u32 %s25, 1
          %s140 = smul.addr %s139, 8
          %s141 = scalar_lea.vmem [#allocation4], %s140
          %s143 = ssub.s32 128, 128
          %144 = vsyncadd %s138, %s143
          %s145 = smul.addr %s15, 2
          %s146 = smul.addr %s145, 64
          %s147 = scalar_lea.hbm %s0, %s146
          %s149 = sshll.u32 %s141, 4
          %s150 = int_to_ptr.vmem [resolvable:$true] %s149
          %152 = dma.hbm_to_vmem [thread:$0]  %s147, 128, %s150, %s138
        $region28: #{tpu_custom_call.1} parent=23 // pred_fallthru
          _
      $region24: #{tpu_custom_call.1} parent=5 // pred_fallthru
        _
      %p153 = scmp.le.s32.totalorder 1, %s15
      %p154 = scmp.lt.s32.totalorder %s15, 3
      %p155 = pnand %p153, %p154
      %p156 = pneg %p155
      // Predicated region
      $region29: #{tpu_custom_call.1} parent=5 // pred_check
        _
      $region30: #{tpu_custom_call.1} parent=5 // pred_check_branch
        %158 = sbr.rel (%p155) target = $region32
      $region31: #{tpu_custom_call.1} parent=5 // pred_region
        %s159 = ssub.s32 %s15, 1
        %s160 = sand.u32 %s28, 1
        %s161 = scalar_lea.sflag [#allocation5], %s160
        %s162 = sand.u32 %s28, 1
        %s163 = smul.addr %s162, 8
        %s164 = scalar_lea.vmem [#allocation4], %s163
        // Predicated region
        $region33: #{tpu_custom_call.1} parent=31 // pred_check
          %p165 = pneg %p41
        $region34: #{tpu_custom_call.1} parent=31 // pred_check_branch
          %167 = sbr.rel (%p165) target = $region36
        $region35: #{tpu_custom_call.1} parent=31 // pred_region
          %168 = dma.done %s161, 128
        $region36: #{tpu_custom_call.1} parent=31 // pred_fallthru
          _
        %s169 = sand.u32 %s28, 1
        %s170 = scalar_lea.sflag [#allocation5], %s169
        %s171 = sand.u32 %s28, 1
        %s172 = smul.addr %s171, 8
        %s173 = scalar_lea.vmem [#allocation4], %s172
        %p174 = pneg %p41
        %p175 = pneg %p38
        %p176 = pneg %p62
        %p177 = pneg %p59
        %p178 = pneg %p83
        %p179 = pneg %p80
        %p180 = pneg %p109
        %p181 = pneg %p106
        %s182 = sand.u32 %s96, 1
        %s183 = scalar_lea.sflag [#allocation6], %s182
        %s184 = sand.u32 %s96, 1
        %s185 = smul.addr %s184, 16
        %s186 = scalar_lea.vmem [#allocation7], %s185
        %vm187 = vcmask 134144
        %188 = vst.msk [vmem:[#allocation2] sm:$0xf] %vm187, 0.0
        %vm189 = vcmask 273544
        %190 = vst.msk [vmem:[#allocation2 + $0x8] sm:$0xf] %vm189, 0.0
        %v191 = vld [vmem:[%s164] sm:$0xff]
        %193 = vrot.lane.b32.xlu0 %v191, 17
        %v194 = vpop.permute.xlu0 %193
        %v195 = vrot.slane %v194, 4
        %vm196 = vcmask 138240
        %v197 = vsel %vm196, %v195, %v194
        %vm200 = vcmask 1043592
        %vm201 = vcmask 1047556
        %vm202 = vmor %vm201, %vm200
        %203 = vst.msk [vmem:[#allocation2] sm:$0xff] %vm202, %v197
        %204 = vst.msk [vmem:[#allocation2 + $0x8] sm:$0xf] %vm187, %v195
        %v205 = vlaneseq
        %v206 = vand.u32 %v205, 127
        %v207 = vadd.s32 %v206, 128
        %vm208 = vcmp.lt.s32.totalorder %v206, 0
        %v209 = vsub.s32 0, %v206
        %v210 = vsel %vm208, %v209, %v206
        %v211 = vshrl.u32 %v210, 4
        %v212 = vand.u32 %v210, 15
        %v213 = vsub.s32 0, %v212
        %v214 = vsel %vm208, %v213, %v212
        %vm215 = vcmp.lt.s32.totalorder %v207, 0
        %v216 = vsub.s32 0, %v207
        %v217 = vsel %vm215, %v216, %v207
        %v218 = vshrl.u32 %v217, 4
        %v219 = vand.u32 %v217, 15
        %v220 = vsub.s32 0, %v219
        %v221 = vsel %vm215, %v220, %v219
        %vm222 = vcmp.ne.s32.totalorder %v214, 0
        %vm223 = vcmp.ne.s32.totalorder %v221, 0
        %vm224 = vcmp.lt.s32.totalorder %v214, 0
        %vm225 = vcmp.lt.s32.totalorder %v221, 0
        %vm226 = vmand %vm224, %vm222
        %vm227 = vmand %vm225, %vm223
        %v228 = vadd.s32 %v214, 16
        %v229 = vadd.s32 %v221, 16
        %v230 = vsel %vm226, %v228, %v214
        %v231 = vsel %vm227, %v229, %v221
        %vm232 = vcmp.ge.s32.totalorder %v230, 1
        %vm233 = vcmp.ge.s32.totalorder %v231, 1
        %vm234 = vcmp.lt.s32.totalorder %v230, 15
        %vm235 = vcmp.lt.s32.totalorder %v231, 15
        %v236 = vld [vmem:[%s1] sm:$0xf]
        %v237 = vld [vmem:[#allocation2] sm:$0x33]
        %v238 = vsel %vm232, 1, 0
        %v239 = vsel %vm233, 1, 0
        %vm240 = vcmp.eq.s32.totalorder %v238, 1
        %vm241 = vcmp.eq.s32.totalorder %v239, 1
        %v243 = vcombine.high %v237, %v237
        %v245 = vsel %vm240, %v237, 0.0
        %v246 = vsel %vm241, %v243, 0.0
        %248 = vset.pattern.permute.xlu0 0
        %249 = vperm.xlu0 %248, %v236
        %v250 = vpop.permute.xlu0 %249
        %v252 = vmul.f32 %v245, %v250
        %v253 = vmul.f32 %v246, %v250
        %v254 = vadd.f32 %v252, 0.0
        %v255 = vadd.f32 %v253, 0.0
        %v256 = vld [vmem:[#allocation2] sm:$0x33]
        %v257 = vld [vmem:[#allocation2 + $0x8] sm:$0x3]
        %258 = vset.pattern.permute.xlu0 1
        %259 = vperm.xlu0 %258, %v236
        %v260 = vpop.permute.xlu0 %259
        %v262 = vunpack.c.l.s4 839922192
        %v263 = vunpack.c.0.s8 %v262
        %v264 = vlaneseq
        %v265 = vshrl.u32 %v264, 7
        %v266 = vsub.s32 %v263, %v265
        %v267 = vrot.slane %v260, %v266
        %v269 = vmul.f32 %v256, %v267
        %v270 = vmul.f32 %v257, %v267
        %v273 = vcombine.high %v269, %v269
        %274 = vrot.lane.b32.xlu0 %v269, 127
        %v275 = vpop.permute.xlu0 %274
        %276 = vrot.lane.b32.xlu0 %v273, 127
        %v277 = vpop.permute.xlu0 %276
        %278 = vrot.lane.b32.xlu0 %v270, 127
        %v279 = vpop.permute.xlu0 %278
        %vm280 = vcmask 1039360
        %v281 = vsel %vm280, %v275, %v277
        %v282 = vsel %vm280, %v277, %v279
        %v285 = vadd.f32 %v254, %v281
        %v286 = vadd.f32 %v255, %v282
        %v287 = vld [vmem:[#allocation2] sm:$0x33]
        %v288 = vld [vmem:[#allocation2 + $0x8] sm:$0x3]
        %v289 = vsel %vm234, 1, 0
        %v290 = vsel %vm235, 1, 0
        %vm291 = vcmp.eq.s32.totalorder %v289, 1
        %vm292 = vcmp.eq.s32.totalorder %v290, 1
        %v295 = vcombine.high %v287, %v287
        %296 = vrot.lane.b32.xlu0 %v287, 126
        %v297 = vpop.permute.xlu0 %296
        %298 = vrot.lane.b32.xlu0 %v295, 126
        %v299 = vpop.permute.xlu0 %298
        %300 = vrot.lane.b32.xlu0 %v288, 126
        %v301 = vpop.permute.xlu0 %300
        %vm302 = vcmask 1031168
        %v303 = vsel %vm302, %v297, %v299
        %v304 = vsel %vm302, %v299, %v301
        %v307 = vsel %vm291, %v303, 0.0
        %v308 = vsel %vm292, %v304, 0.0
        %309 = vset.pattern.permute.xlu0 2
        %310 = vperm.xlu0 %309, %v236
        %v311 = vpop.permute.xlu0 %310
        %v313 = vmul.f32 %v307, %v311
        %v314 = vmul.f32 %v308, %v311
        %v315 = vadd.f32 %v285, %v313
        %v316 = vadd.f32 %v286, %v314
        %v317 = vld [vmem:[#allocation2] sm:$0x33]
        %v318 = vld [vmem:[#allocation2 + $0x8] sm:$0x3]
        %v321 = vcombine.high %v317, %v317
        %322 = vrot.lane.b32.xlu0 %v317, 112
        %v323 = vpop.permute.xlu0 %322
        %324 = vrot.lane.b32.xlu0 %v321, 112
        %v325 = vpop.permute.xlu0 %324
        %326 = vrot.lane.b32.xlu0 %v318, 112
        %v327 = vpop.permute.xlu0 %326
        %vm328 = vcmask 916480
        %v329 = vsel %vm328, %v323, %v325
        %v330 = vsel %vm328, %v325, %v327
        %v333 = vsel %vm240, %v329, 0.0
        %v334 = vsel %vm241, %v330, 0.0
        %335 = vset.pattern.permute.xlu0 3
        %336 = vperm.xlu0 %335, %v236
        %v337 = vpop.permute.xlu0 %336
        %v339 = vmul.f32 %v333, %v337
        %v340 = vmul.f32 %v334, %v337
        %v341 = vadd.f32 %v315, %v339
        %v342 = vadd.f32 %v316, %v340
        %v343 = vld [vmem:[#allocation2] sm:$0x33]
        %v344 = vld [vmem:[#allocation2 + $0x8] sm:$0x3]
        %345 = vset.pattern.permute.xlu0 4
        %346 = vperm.xlu0 %345, %v236
        %v347 = vpop.permute.xlu0 %346
        %v349 = vunpack.c.l.s4 839922192
        %v350 = vunpack.c.0.s8 %v349
        %v351 = vlaneseq
        %v352 = vshrl.u32 %v351, 7
        %v353 = vsub.s32 %v350, %v352
        %v354 = vrot.slane %v347, %v353
        %v356 = vmul.f32 %v343, %v354
        %v357 = vmul.f32 %v344, %v354
        %v360 = vcombine.high %v356, %v356
        %361 = vrot.lane.b32.xlu0 %v356, 111
        %v362 = vpop.permute.xlu0 %361
        %363 = vrot.lane.b32.xlu0 %v360, 111
        %v364 = vpop.permute.xlu0 %363
        %365 = vrot.lane.b32.xlu0 %v357, 111
        %v366 = vpop.permute.xlu0 %365
        %vm367 = vcmask 908288
        %v368 = vsel %vm367, %v362, %v364
        %v369 = vsel %vm367, %v364, %v366
        %v372 = vadd.f32 %v341, %v368
        %v373 = vadd.f32 %v342, %v369
        %v374 = vld [vmem:[#allocation2] sm:$0x33]
        %v375 = vld [vmem:[#allocation2 + $0x8] sm:$0x3]
        %v378 = vcombine.high %v374, %v374
        %379 = vrot.lane.b32.xlu0 %v374, 110
        %v380 = vpop.permute.xlu0 %379
        %381 = vrot.lane.b32.xlu0 %v378, 110
        %v382 = vpop.permute.xlu0 %381
        %383 = vrot.lane.b32.xlu0 %v375, 110
        %v384 = vpop.permute.xlu0 %383
        %vm385 = vcmask 900096
        %v386 = vsel %vm385, %v380, %v382
        %v387 = vsel %vm385, %v382, %v384
        %v390 = vsel %vm291, %v386, 0.0
        %v391 = vsel %vm292, %v387, 0.0
        %392 = vset.pattern.permute.xlu0 5
        %393 = vperm.xlu0 %392, %v236
        %v394 = vpop.permute.xlu0 %393
        %v396 = vmul.f32 %v390, %v394
        %v397 = vmul.f32 %v391, %v394
        %v398 = vadd.f32 %v372, %v396
        %v399 = vadd.f32 %v373, %v397
        %v400 = vld [vmem:[#allocation2] sm:$0x33]
        %v401 = vld [vmem:[#allocation2 + $0x8] sm:$0x3]
        %v404 = vcombine.high %v400, %v400
        %405 = vrot.lane.b32.xlu0 %v400, 96
        %v406 = vpop.permute.xlu0 %405
        %407 = vrot.lane.b32.xlu0 %v404, 96
        %v408 = vpop.permute.xlu0 %407
        %409 = vrot.lane.b32.xlu0 %v401, 96
        %v410 = vpop.permute.xlu0 %409
        %vm411 = vcmask 785408
        %v412 = vsel %vm411, %v406, %v408
        %v413 = vsel %vm411, %v408, %v410
        %v416 = vsel %vm240, %v412, 0.0
        %v417 = vsel %vm241, %v413, 0.0
        %418 = vset.pattern.permute.xlu0 6
        %419 = vperm.xlu0 %418, %v236
        %v420 = vpop.permute.xlu0 %419
        %v422 = vmul.f32 %v416, %v420
        %v423 = vmul.f32 %v417, %v420
        %v424 = vadd.f32 %v398, %v422
        %v425 = vadd.f32 %v399, %v423
        %v426 = vld [vmem:[#allocation2] sm:$0x33]
        %v427 = vld [vmem:[#allocation2 + $0x8] sm:$0x3]
        %428 = vset.pattern.permute.xlu0 7
        %429 = vperm.xlu0 %428, %v236
        %v430 = vpop.permute.xlu0 %429
        %v432 = vunpack.c.l.s4 839922192
        %v433 = vunpack.c.0.s8 %v432
        %v434 = vlaneseq
        %v435 = vshrl.u32 %v434, 7
        %v436 = vsub.s32 %v433, %v435
        %v437 = vrot.slane %v430, %v436
        %v439 = vmul.f32 %v426, %v437
        %v440 = vmul.f32 %v427, %v437
        %v443 = vcombine.high %v439, %v439
        %444 = vrot.lane.b32.xlu0 %v439, 95
        %v445 = vpop.permute.xlu0 %444
        %446 = vrot.lane.b32.xlu0 %v443, 95
        %v447 = vpop.permute.xlu0 %446
        %448 = vrot.lane.b32.xlu0 %v440, 95
        %v449 = vpop.permute.xlu0 %448
        %vm450 = vcmask 777216
        %v451 = vsel %vm450, %v445, %v447
        %v452 = vsel %vm450, %v447, %v449
        %v455 = vadd.f32 %v424, %v451
        %v456 = vadd.f32 %v425, %v452
        %v457 = vld [vmem:[#allocation2] sm:$0x33]
        %v458 = vld [vmem:[#allocation2 + $0x8] sm:$0x3]
        %v461 = vcombine.high %v457, %v457
        %462 = vrot.lane.b32.xlu0 %v457, 94
        %v463 = vpop.permute.xlu0 %462
        %464 = vrot.lane.b32.xlu0 %v461, 94
        %v465 = vpop.permute.xlu0 %464
        %466 = vrot.lane.b32.xlu0 %v458, 94
        %v467 = vpop.permute.xlu0 %466
        %vm468 = vcmask 769024
        %v469 = vsel %vm468, %v463, %v465
        %v470 = vsel %vm468, %v465, %v467
        %v473 = vsel %vm291, %v469, 0.0
        %v474 = vsel %vm292, %v470, 0.0
        %475 = vset.pattern.permute.xlu0 8
        %476 = vperm.xlu0 %475, %v236
        %v477 = vpop.permute.xlu0 %476
        %v479 = vmul.f32 %v473, %v477
        %v480 = vmul.f32 %v474, %v477
        %v481 = vadd.f32 %v455, %v479
        %v482 = vadd.f32 %v456, %v480
        %v485 = vcombine.low %v481, %v482
        %487 = vst [vmem:[#allocation3] sm:$0x33] %v485
        %v488 = vld [vmem:[#allocation2] sm:$0xcc]
        %v490 = vcombine.high %v488, %v488
        %v491 = vrot.slane %v488, 2
        %v492 = vrot.slane %v490, 2
        %v495 = vsel %vm240, %v491, 0.0
        %v496 = vsel %vm241, %v492, 0.0
        %v497 = vrot.slane %v250, 2
        %v499 = vmul.f32 %v495, %v497
        %v500 = vmul.f32 %v496, %v497
        %v501 = vadd.f32 %v499, 0.0
        %v502 = vadd.f32 %v500, 0.0
        %v503 = vld [vmem:[#allocation2 + $0x8] sm:$0xc]
        %v504 = vmul.f32 %v488, %v267
        %v505 = vmul.f32 %v503, %v267
        %v508 = vcombine.high %v504, %v504
        %v509 = vrot.slane %v504, 2
        %v510 = vrot.slane %v508, 2
        %v511 = vrot.slane %v505, 2
        %512 = vrot.lane.b32.xlu0 %v509, 127
        %v513 = vpop.permute.xlu0 %512
        %514 = vrot.lane.b32.xlu0 %v510, 127
        %v515 = vpop.permute.xlu0 %514
        %516 = vrot.lane.b32.xlu0 %v511, 127
        %v517 = vpop.permute.xlu0 %516
        %v518 = vsel %vm280, %v513, %v515
        %v519 = vsel %vm280, %v515, %v517
        %v522 = vadd.f32 %v501, %v518
        %v523 = vadd.f32 %v502, %v519
        %v525 = vrot.slane %v503, 2
        %526 = vrot.lane.b32.xlu0 %v491, 126
        %v527 = vpop.permute.xlu0 %526
        %528 = vrot.lane.b32.xlu0 %v492, 126
        %v529 = vpop.permute.xlu0 %528
        %530 = vrot.lane.b32.xlu0 %v525, 126
        %v531 = vpop.permute.xlu0 %530
        %v532 = vsel %vm302, %v527, %v529
        %v533 = vsel %vm302, %v529, %v531
        %v536 = vsel %vm291, %v532, 0.0
        %v537 = vsel %vm292, %v533, 0.0
        %v538 = vrot.slane %v311, 2
        %v540 = vmul.f32 %v536, %v538
        %v541 = vmul.f32 %v537, %v538
        %v542 = vadd.f32 %v522, %v540
        %v543 = vadd.f32 %v523, %v541
        %544 = vrot.lane.b32.xlu0 %v491, 112
        %v545 = vpop.permute.xlu0 %544
        %546 = vrot.lane.b32.xlu0 %v492, 112
        %v547 = vpop.permute.xlu0 %546
        %548 = vrot.lane.b32.xlu0 %v525, 112
        %v549 = vpop.permute.xlu0 %548
        %v550 = vsel %vm328, %v545, %v547
        %v551 = vsel %vm328, %v547, %v549
        %v554 = vsel %vm240, %v550, 0.0
        %v555 = vsel %vm241, %v551, 0.0
        %v556 = vrot.slane %v337, 2
        %v558 = vmul.f32 %v554, %v556
        %v559 = vmul.f32 %v555, %v556
        %v560 = vadd.f32 %v542, %v558
        %v561 = vadd.f32 %v543, %v559
        %v562 = vmul.f32 %v488, %v354
        %v563 = vmul.f32 %v503, %v354
        %v566 = vcombine.high %v562, %v562
        %v567 = vrot.slane %v562, 2
        %v568 = vrot.slane %v566, 2
        %v569 = vrot.slane %v563, 2
        %570 = vrot.lane.b32.xlu0 %v567, 111
        %v571 = vpop.permute.xlu0 %570
        %572 = vrot.lane.b32.xlu0 %v568, 111
        %v573 = vpop.permute.xlu0 %572
        %574 = vrot.lane.b32.xlu0 %v569, 111
        %v575 = vpop.permute.xlu0 %574
        %v576 = vsel %vm367, %v571, %v573
        %v577 = vsel %vm367, %v573, %v575
        %v580 = vadd.f32 %v560, %v576
        %v581 = vadd.f32 %v561, %v577
        %582 = vrot.lane.b32.xlu0 %v491, 110
        %v583 = vpop.permute.xlu0 %582
        %584 = vrot.lane.b32.xlu0 %v492, 110
        %v585 = vpop.permute.xlu0 %584
        %586 = vrot.lane.b32.xlu0 %v525, 110
        %v587 = vpop.permute.xlu0 %586
        %v588 = vsel %vm385, %v583, %v585
        %v589 = vsel %vm385, %v585, %v587
        %v592 = vsel %vm291, %v588, 0.0
        %v593 = vsel %vm292, %v589, 0.0
        %v594 = vrot.slane %v394, 2
        %v596 = vmul.f32 %v592, %v594
        %v597 = vmul.f32 %v593, %v594
        %v598 = vadd.f32 %v580, %v596
        %v599 = vadd.f32 %v581, %v597
        %600 = vrot.lane.b32.xlu0 %v491, 96
        %v601 = vpop.permute.xlu0 %600
        %602 = vrot.lane.b32.xlu0 %v492, 96
        %v603 = vpop.permute.xlu0 %602
        %604 = vrot.lane.b32.xlu0 %v525, 96
        %v605 = vpop.permute.xlu0 %604
        %v606 = vsel %vm411, %v601, %v603
        %v607 = vsel %vm411, %v603, %v605
        %v610 = vsel %vm240, %v606, 0.0
        %v611 = vsel %vm241, %v607, 0.0
        %v612 = vrot.slane %v420, 2
        %v614 = vmul.f32 %v610, %v612
        %v615 = vmul.f32 %v611, %v612
        %v616 = vadd.f32 %v598, %v614
        %v617 = vadd.f32 %v599, %v615
        %v618 = vmul.f32 %v488, %v437
        %v619 = vmul.f32 %v503, %v437
        %v622 = vcombine.high %v618, %v618
        %v623 = vrot.slane %v618, 2
        %v624 = vrot.slane %v622, 2
        %v625 = vrot.slane %v619, 2
        %626 = vrot.lane.b32.xlu0 %v623, 95
        %v627 = vpop.permute.xlu0 %626
        %628 = vrot.lane.b32.xlu0 %v624, 95
        %v629 = vpop.permute.xlu0 %628
        %630 = vrot.lane.b32.xlu0 %v625, 95
        %v631 = vpop.permute.xlu0 %630
        %v632 = vsel %vm450, %v627, %v629
        %v633 = vsel %vm450, %v629, %v631
        %v636 = vadd.f32 %v616, %v632
        %v637 = vadd.f32 %v617, %v633
        %638 = vrot.lane.b32.xlu0 %v491, 94
        %v639 = vpop.permute.xlu0 %638
        %640 = vrot.lane.b32.xlu0 %v492, 94
        %v641 = vpop.permute.xlu0 %640
        %642 = vrot.lane.b32.xlu0 %v525, 94
        %v643 = vpop.permute.xlu0 %642
        %v644 = vsel %vm468, %v639, %v641
        %v645 = vsel %vm468, %v641, %v643
        %v648 = vsel %vm291, %v644, 0.0
        %v649 = vsel %vm292, %v645, 0.0
        %v650 = vrot.slane %v477, 2
        %v652 = vmul.f32 %v648, %v650
        %v653 = vmul.f32 %v649, %v650
        %v654 = vadd.f32 %v636, %v652
        %v655 = vadd.f32 %v637, %v653
        %v658 = vcombine.low %v654, %v655
        %v659 = vrot.slane %v658, 6
        %661 = vst [vmem:[#allocation3] sm:$0xcc] %v659
        %v662 = vld [vmem:[%s2] sm:$0xff]
        %v663 = vld [vmem:[#allocation3] sm:$0xff]
        %v665 = vcombine.high %v663, %v663
        %vm666 = vcmask 31744
        %v668 = vsel %vm666, %v662, 0
        %vm670 = vcmask 1043456
        %v671 = vsel %vm670, %v663, 0
        %v673 = vsel %vm670, %v665, 0
        %675 = vmatprep.subr.mxu0 %v673
        %676 = vmatpush1.msra.mxu0 %v671
        %677 = vmatprep.subr.mxu0 0.0
        %678 = vmatpush1.msra.mxu0 0.0
        %679 = vmatprep.subr.mxu0 0.0
        %680 = vmatpush1.msra.mxu0 0.0
        %681 = vmatprep.subr.mxu0 0.0
        %682 = vmatpush1.msra.mxu0 0.0
        %683 = vmatprep.subr.mxu0 0.0
        %684 = vmatpush1.msra.mxu0 0.0
        %685 = vmatprep.subr.mxu0 0.0
        %686 = vmatpush1.msra.mxu0 0.0
        %687 = vmatprep.subr.mxu0 0.0
        %688 = vmatpush1.msra.mxu0 0.0
        %689 = vmatprep.subr.mxu0 0.0
        %690 = vmatpush1.msra.mxu0 0.0
        %691 = vmatprep.subr.mxu0 0.0
        %692 = vmatpush1.msra.mxu0 0.0
        %693 = vmatprep.subr.mxu0 0.0
        %694 = vmatpush1.msra.mxu0 0.0
        %695 = vmatprep.subr.mxu0 0.0
        %696 = vmatpush1.msra.mxu0 0.0
        %697 = vmatprep.subr.mxu0 0.0
        %698 = vmatpush1.msra.mxu0 0.0
        %699 = vmatprep.subr.mxu0 0.0
        %700 = vmatpush1.msra.mxu0 0.0
        %701 = vmatprep.subr.mxu0 0.0
        %702 = vmatpush1.msra.mxu0 0.0
        %703 = vmatprep.subr.mxu0 0.0
        %704 = vmatpush1.msra.mxu0 0.0
        %705 = vmatprep.subr.mxu0 0.0
        %706 = vmatpush1.msra.mxu0 0.0
        %707 = vmatprep.subr.mxu0 0.0
        %708 = vmatpush1.msra.mxu0 0.0
        %709 = vmatprep.subr.mxu0 0.0
        %710 = vmatpush1.msra.mxu0 0.0
        %711 = vmatprep.subr.mxu0 0.0
        %712 = vmatpush1.msra.mxu0 0.0
        %713 = vmatprep.subr.mxu0 0.0
        %714 = vmatpush1.msra.mxu0 0.0
        %715 = vmatprep.subr.mxu0 0.0
        %716 = vmatpush1.msra.mxu0 0.0
        %717 = vmatprep.subr.mxu0 0.0
        %718 = vmatpush1.msra.mxu0 0.0
        %719 = vmatprep.subr.mxu0 0.0
        %720 = vmatpush1.msra.mxu0 0.0
        %721 = vmatprep.subr.mxu0 0.0
        %722 = vmatpush1.msra.mxu0 0.0
        %723 = vmatprep.subr.mxu0 0.0
        %724 = vmatpush1.msra.mxu0 0.0
        %725 = vmatprep.subr.mxu0 0.0
        %726 = vmatpush1.msra.mxu0 0.0
        %727 = vmatprep.subr.mxu0 0.0
        %728 = vmatpush1.msra.mxu0 0.0
        %729 = vmatprep.subr.mxu0 0.0
        %730 = vmatpush1.msra.mxu0 0.0
        %731 = vmatprep.subr.mxu0 0.0
        %732 = vmatpush1.msra.mxu0 0.0
        %733 = vmatprep.subr.mxu0 0.0
        %734 = vmatpush1.msra.mxu0 0.0
        %735 = vmatprep.subr.mxu0 0.0
        %736 = vmatpush1.msra.mxu0 0.0
        %737 = vmatprep.subr.mxu0 0.0
        %738 = vmatpush1.msra.mxu0 0.0
        %739 = vmatprep.mubr.f32.mxu0 0.0
        %740 = vmatmul.mubr.f32.gmra.mrb[0].mxu0 %v668
        %v741 = vpop.f32.mrb[0].mxu0
        %v742 = vadd.f32 0.0, %v741
        %v743 = vpop.f32.mrb[0].mxu0
        %v744 = vadd.f32 0.0, %v743
        %745 = vdwg.mxu0
        %746 = vst [vmem:[%s186] sm:$0xff] %v742
        %747 = vst [vmem:[%s186 + $0x8] sm:$0xff] %v744
        %s748 = sand.u32 %s96, 1
        %s749 = scalar_lea.sflag [#allocation6], %s748
        %s750 = sand.u32 %s96, 1
        %s751 = smul.addr %s750, 16
        %s752 = scalar_lea.vmem [#allocation7], %s751
        // Predicated region
        $region37: #{tpu_custom_call.1} parent=31 // pred_check
          %p753 = pneg %p106
        $region38: #{tpu_custom_call.1} parent=31 // pred_check_branch
          %755 = sbr.rel (%p753) target = $region40
        $region39: #{tpu_custom_call.1} parent=31 // pred_region
          %s757 = ssub.s32 256, 256
          %758 = vsyncadd %s749, %s757
          %s759 = smul.addr %s20, 2
          %s760 = smul.addr %s759, 128
          %s761 = scalar_lea.hbm %s3, %s760
          %s763 = sshll.u32 %s752, 4
          %s764 = int_to_ptr.vmem [resolvable:$true] %s763
          %766 = dma.vmem_to_hbm [thread:$0]  %s764, 256, %s761, %s749
        $region40: #{tpu_custom_call.1} parent=31 // pred_fallthru
          _
      $region32: #{tpu_custom_call.1} parent=5 // pred_fallthru
        _
      %p767 = scmp.le.s32.totalorder 2, %s15
      // Predicated region
      $region41: #{tpu_custom_call.1} parent=5 // pred_check
        %p768 = pneg %p767
      $region42: #{tpu_custom_call.1} parent=5 // pred_check_branch
        %770 = sbr.rel (%p768) target = $region44
      $region43: #{tpu_custom_call.1} parent=5 // pred_region
        %s771 = ssub.s32 %s15, 2
        // Predicated region
        $region45: #{tpu_custom_call.1} parent=43 // pred_check
          %p772 = pneg %p112
        $region46: #{tpu_custom_call.1} parent=43 // pred_check_branch
          %774 = sbr.rel (%p772) target = $region48
        $region47: #{tpu_custom_call.1} parent=43 // pred_region
          %s775 = sand.u32 %s97, 1
          %s776 = scalar_lea.sflag [#allocation6], %s775
          %s777 = sand.u32 %s97, 1
          %s778 = smul.addr %s777, 16
          %s779 = scalar_lea.vmem [#allocation7], %s778
          %780 = dma.done %s776, 256
        $region48: #{tpu_custom_call.1} parent=43 // pred_fallthru
          _
      $region44: #{tpu_custom_call.1} parent=5 // pred_fallthru
        _
    $region6: #{tpu_custom_call.1} parent=1 // loop_footer
      %s19 = sadd.s32 1, %s15
    $region7: #{tpu_custom_call.1} parent=1 // loop_footer_branch
      %14 = sbr.rel target = $region3
    $region8: #{tpu_custom_call.1} parent=1 // loop_exit
      _
    %781 = vsyncpa [#allocation5], 1
    %s782 = scalar_lea.sflag [#allocation5], 1
    %783 = vsyncpa %s782, 1
    %784 = vsyncpa [#allocation6], 1
    %s785 = scalar_lea.sflag [#allocation6], 1
    %786 = vsyncpa %s785, 1

</llo_original>
